<compile_context>
chip_gen: v5e
topology: v5e:2x2
jax: 0.10.0
libtpu: 0.0.40
codegen_flags: <defaults>
</compile_context>

<pallas_src>
import functools

import jax
import jax.numpy as jnp
from jax.experimental import pallas as pl
from jax.experimental.pallas import tpu as pltpu


def _mpnn_kernel(x_ref, a_ref, w_ref, b_ref, o_ref, *, k, negative_slope):
    """One block of TB batch elements per grid step.

    x_ref : (TB, N, D)      VMEM
    a_ref : (TB, N, N)      VMEM
    w_ref : (k, D, D_out)   VMEM  (stack of W_k^T; constant across grid steps)
    b_ref : (1, D_out)      VMEM  (bias summed over the k heads, f32)
    o_ref : (TB, N, D_out)  VMEM
    """
    x = x_ref[...]                      # native dtype straight into the MXU
    a = a_ref[...]

    # Residual + summed bias, accumulated in f32.
    y = x.astype(jnp.float32) + b_ref[...].astype(jnp.float32)

    # Feature propagation: cur_k = A @ cur_{k-1}  (== A^k @ X, reassociated; A^k
    # is never materialized).  Each head's Linear is applied immediately and
    # accumulated -- no concat, no (TB, N, k*D) intermediate.  k is static.
    cur = x
    for kk in range(k):
        cur = jnp.einsum(
            "bij,bjd->bid", a, cur, preferred_element_type=jnp.float32
        ).astype(x.dtype)               # keep MXU operands in the model dtype
        y = y + jnp.einsum(
            "bnd,de->bne", cur, w_ref[kk], preferred_element_type=jnp.float32
        )

    # Fused leaky_relu, then downcast once on store.
    o_ref[...] = jnp.where(y > 0, y, negative_slope * y).astype(o_ref.dtype)


def _vmem_budget_bytes():
    """~70% of the per-TensorCore VMEM (generation-aware, conservative fallback)."""
    cap = 64 * 1024 * 1024                       # v7x physical (smallest generation)
    try:
        cap = int(pltpu.get_tpu_info().vmem_capacity_bytes)
    except Exception:
        pass
    return int(cap * 0.7)


def _block_bytes(tb, N, D, D_out, k, itemsize):
    """Per-grid-step VMEM footprint: double-buffered pipelined blocks, resident
    (conservatively double-buffered) weights, and in-body f32 intermediates."""
    pipelined = 2 * tb * (N * D + N * N + N * D_out) * itemsize   # X, A, out x 2 bufs
    weights = 2 * (k * D * D_out * itemsize + D_out * 4)
    interm = tb * (N * N + N * D) * itemsize + tb * N * (2 * D + D_out) * 4
    return pipelined + weights + interm


def _choose_tb(B, N, D, D_out, k, itemsize):
    budget = _vmem_budget_bytes()
    fits = [tb for tb in range(1, B + 1)
            if B % tb == 0 and _block_bytes(tb, N, D, D_out, k, itemsize) <= budget]
    if not fits:
        # TODO(synk): add an N-tiled path (stream row-tiles of A while keeping the
        # previous power's full (N, D) features in VMEM scratch) for graphs whose
        # single-batch block exceeds VMEM; failing loudly here beats a late Mosaic
        # VMEM error.
        raise ValueError(
            f"MPNN_mk_v2 Pallas kernel: a single batch element (N={N}, D={D}, "
            f"D_out={D_out}, k={k}) needs "
            f"{_block_bytes(1, N, D, D_out, k, itemsize)} bytes of VMEM, which "
            f"exceeds the budget of {budget} bytes; N-tiling is required."
        )
    # Keep >= 2 grid steps (pipelining + v7x's two TensorCores), preferably >= 4
    # so the A-block DMA (dominant traffic) overlaps compute.  Otherwise take the
    # largest block that fits (single-TC v5e/v6e favor maximal TB).
    target_steps = min(B, 4)
    preferred = [tb for tb in fits if B // tb >= target_steps]
    tb = max(preferred) if preferred else max(fits)
    return tb, budget


def _build_and_run(X, A, w_t, b_sum, TB, budget, k, negative_slope,
                   single_buffer_consts):
    B, N, D = X.shape
    D_out = w_t.shape[-1]

    def const_spec(shape, index_map):
        # Constant-index blocks are never re-fetched; a single buffer saves VMEM.
        if single_buffer_consts and hasattr(pl, "Buffered"):
            return pl.BlockSpec(shape, index_map, pipeline_mode=pl.Buffered(1))
        return pl.BlockSpec(shape, index_map)

    kernel = functools.partial(_mpnn_kernel, k=k, negative_slope=negative_slope)

    itemsize = jnp.dtype(X.dtype).itemsize
    flops = int(2 * B * N * N * D * k + 2 * B * N * D * D_out * k)
    bytes_accessed = int(
        (X.size + A.size + w_t.size + B * N * D_out) * itemsize + int(b_sum.size) * 4
    )

    return pl.pallas_call(
        kernel,
        out_shape=jax.ShapeDtypeStruct((B, N, D_out), X.dtype),
        grid_spec=pltpu.PrefetchScalarGridSpec(
            num_scalar_prefetch=0,
            grid=(B // TB,),
            in_specs=[
                pl.BlockSpec((TB, N, D), lambda b: (b, 0, 0)),
                pl.BlockSpec((TB, N, N), lambda b: (b, 0, 0)),
                const_spec((k, D, D_out), lambda b: (0, 0, 0)),
                const_spec((1, D_out), lambda b: (0, 0)),
            ],
            out_specs=pl.BlockSpec((TB, N, D_out), lambda b: (b, 0, 0)),
        ),
        compiler_params=pltpu.CompilerParams(
            dimension_semantics=("parallel",),
            vmem_limit_bytes=int(budget),
        ),
        cost_estimate=pl.CostEstimate(
            flops=flops, transcendentals=0, bytes_accessed=bytes_accessed
        ),
    )(X, A, w_t, b_sum)


def mpnn_mk_v2(X, A, weights, biases, *, negative_slope=0.01):
    """leaky_relu(sum_k (A^(k+1) @ X) @ W_k^T + b_k + X)  ->  (B, N, D_out).

    X       : (B, N, D_in)
    A       : (B, N, N)
    weights : (k, D_out, D_in)   -- theta[kk].weight in PyTorch layout
    biases  : (k, D_out)         -- theta[kk].bias

    Note: with bf16 inputs the propagated features are downcast after each power
    step and A^k @ X is re-associated as A @ (A @ X); expect looser tolerances
    vs an all-f32 reference for bf16 and larger k.
    """
    B, N, D = X.shape
    k, D_out, D_in = weights.shape
    assert D_in == D, "weight in_features must match X's feature dim"
    assert D_out == D, "residual `out + X` requires output_dim == input_dim"
    assert A.shape == (B, N, N)

    # Stack of W_k^T (contraction-major) and summed bias -- computed once here,
    # not per grid step.
    w_t = jnp.transpose(weights, (0, 2, 1)).astype(X.dtype)            # (k, D, D_out)
    b_sum = jnp.sum(biases, axis=0, keepdims=True).astype(jnp.float32)  # (1, D_out)

    TB, budget = _choose_tb(B, N, D, D_out, k, jnp.dtype(X.dtype).itemsize)

    try:
        return _build_and_run(X, A, w_t, b_sum, TB, budget, k, negative_slope, True)
    except Exception:
        # Fallback for jax versions where pipeline_mode=pl.Buffered(1) on a
        # constant-index input is unsupported.
        return _build_and_run(X, A, w_t, b_sum, TB, budget, k, negative_slope, False)


def _reference(X, A, weights, biases, negative_slope=0.01):
    """Pure-JAX reference mirroring the PyTorch module exactly."""
    k = weights.shape[0]
    out = None
    A_ = A
    for kk in range(k):
        if kk > 0:
            A_ = jnp.einsum("bij,bjk->bik", A_, A)
        h = jnp.einsum("bij,bjd->bid", A_, X)
        o_k = h @ weights[kk].T + biases[kk]
        out = o_k if out is None else out + o_k
    out = out + X
    return jnp.where(out > 0, out, negative_slope * out).astype(X.dtype)


if __name__ == "__main__":
    # Small shapes consistent with the module's forward: batch=2, nodes=16, hidden=32.
    B, N, D = 2, 16, 32
    k = 2

    key = jax.random.PRNGKey(0)
    kx, ka, kw, kb = jax.random.split(key, 4)
    X = jax.random.normal(kx, (B, N, D), dtype=jnp.float32)
    # Row-normalized random adjacency (keeps A^k @ X well-conditioned).
    A_raw = jax.random.uniform(ka, (B, N, N), dtype=jnp.float32)
    A = A_raw / jnp.sum(A_raw, axis=-1, keepdims=True)
    # Deterministic synthetic Linear params in PyTorch layout (D_out, D_in) per head.
    weights = jax.random.normal(kw, (k, D, D), dtype=jnp.float32) * 0.1
    biases = jax.random.normal(kb, (k, D), dtype=jnp.float32) * 0.1

    out = mpnn_mk_v2(X, A, weights, biases)
    out = jax.block_until_ready(out)

    ref = _reference(X, A, weights, biases)
    assert out.shape == (B, N, D), out.shape
    max_err = float(jnp.max(jnp.abs(out - ref)))
    assert jnp.allclose(out, ref, atol=1e-4, rtol=1e-4), max_err

    print("KERNEL_OK")
</pallas_src>

<mosaic_0001>
module attributes {stable_mosaic.version = 11 : i64} {
  func.func @_mpnn_kernel(%arg0: i32, %arg1: memref<1x16x32xf32, #tpu.memory_space<vmem>>, %arg2: memref<1x16x16xf32, #tpu.memory_space<vmem>>, %arg3: memref<2x32x32xf32, #tpu.memory_space<vmem>>, %arg4: memref<1x32xf32, #tpu.memory_space<vmem>>, %arg5: memref<1x16x32xf32, #tpu.memory_space<vmem>>) attributes {dimension_semantics = [#tpu.dimension_semantics<parallel>], iteration_bounds = array<i64: 2>, scalar_prefetch = 0 : i64, scratch_operands = 0 : i64, tpu.core_type = #tpu.core_type<tc>, window_params = [{transform_indices = @transform_0, window_bounds = array<i64: 1, 16, 32>}, {transform_indices = @transform_1, window_bounds = array<i64: 1, 16, 16>}, {pipeline_mode = #tpu.pipeline_mode<synchronous>, transform_indices = @transform_2, window_bounds = array<i64: 2, 32, 32>}, {pipeline_mode = #tpu.pipeline_mode<synchronous>, transform_indices = @transform_3, window_bounds = array<i64: 1, 32>}, {transform_indices = @transform_4, window_bounds = array<i64: 1, 16, 32>}]} {
    %c0 = arith.constant 0 : index
    %c0_0 = arith.constant 0 : index
    %c0_1 = arith.constant 0 : index
    %0 = vector.load %arg1[%c0, %c0_0, %c0_1] : memref<1x16x32xf32, #tpu.memory_space<vmem>>, vector<1x16x32xf32>
    %c0_2 = arith.constant 0 : index
    %c0_3 = arith.constant 0 : index
    %c0_4 = arith.constant 0 : index
    %1 = vector.load %arg2[%c0_2, %c0_3, %c0_4] : memref<1x16x16xf32, #tpu.memory_space<vmem>>, vector<1x16x16xf32>
    %c0_5 = arith.constant 0 : index
    %c0_6 = arith.constant 0 : index
    %2 = vector.load %arg4[%c0_5, %c0_6] : memref<1x32xf32, #tpu.memory_space<vmem>>, vector<1x32xf32>
    %3 = vector.shape_cast %2 : vector<1x32xf32> to vector<1x1x32xf32>
    %4 = vector.broadcast %3 : vector<1x1x32xf32> to vector<1x16x32xf32>
    %5 = arith.addf %0, %4 : vector<1x16x32xf32>
    "tpu.trace_start"() <{level = 10 : i32, message = "bij,bjd->bid"}> : () -> ()
    %cst = arith.constant dense<0.000000e+00> : vector<1x16x32xf32>
    %6 = tpu.matmul %1, %0, %cst {dimension_numbers = #tpu.dot_dimension_numbers<[2], [1], [1], [2], [0, 0, 0, 1, 1, 2], [0], [0]>} : vector<1x16x16xf32>, vector<1x16x32xf32>, vector<1x16x32xf32> -> vector<1x16x32xf32>
    "tpu.trace_stop"() : () -> ()
    %c0_7 = arith.constant 0 : index
    %c0_8 = arith.constant 0 : index
    %c0_9 = arith.constant 0 : index
    %7 = vector.load %arg3[%c0_7, %c0_8, %c0_9] : memref<2x32x32xf32, #tpu.memory_space<vmem>>, vector<1x32x32xf32>
    %8 = vector.shape_cast %7 : vector<1x32x32xf32> to vector<32x32xf32>
    "tpu.trace_start"() <{level = 10 : i32, message = "bnd,de->bne"}> : () -> ()
    %cst_10 = arith.constant dense<0.000000e+00> : vector<1x16x32xf32>
    %9 = tpu.matmul %6, %8, %cst_10 {dimension_numbers = #tpu.dot_dimension_numbers<[2], [0], [0, 1], [1], [0, 0, 0, 1, 1, 1], [], []>} : vector<1x16x32xf32>, vector<32x32xf32>, vector<1x16x32xf32> -> vector<1x16x32xf32>
    "tpu.trace_stop"() : () -> ()
    %10 = arith.addf %5, %9 : vector<1x16x32xf32>
    "tpu.trace_start"() <{level = 10 : i32, message = "bij,bjd->bid"}> : () -> ()
    %cst_11 = arith.constant dense<0.000000e+00> : vector<1x16x32xf32>
    %11 = tpu.matmul %1, %6, %cst_11 {dimension_numbers = #tpu.dot_dimension_numbers<[2], [1], [1], [2], [0, 0, 0, 1, 1, 2], [0], [0]>} : vector<1x16x16xf32>, vector<1x16x32xf32>, vector<1x16x32xf32> -> vector<1x16x32xf32>
    "tpu.trace_stop"() : () -> ()
    %c1 = arith.constant 1 : index
    %c0_12 = arith.constant 0 : index
    %c0_13 = arith.constant 0 : index
    %12 = vector.load %arg3[%c1, %c0_12, %c0_13] : memref<2x32x32xf32, #tpu.memory_space<vmem>>, vector<1x32x32xf32>
    %13 = vector.shape_cast %12 : vector<1x32x32xf32> to vector<32x32xf32>
    "tpu.trace_start"() <{level = 10 : i32, message = "bnd,de->bne"}> : () -> ()
    %cst_14 = arith.constant dense<0.000000e+00> : vector<1x16x32xf32>
    %14 = tpu.matmul %11, %13, %cst_14 {dimension_numbers = #tpu.dot_dimension_numbers<[2], [0], [0, 1], [1], [0, 0, 0, 1, 1, 1], [], []>} : vector<1x16x32xf32>, vector<32x32xf32>, vector<1x16x32xf32> -> vector<1x16x32xf32>
    "tpu.trace_stop"() : () -> ()
    %15 = arith.addf %10, %14 : vector<1x16x32xf32>
    %cst_15 = arith.constant 0.000000e+00 : f32
    %16 = vector.broadcast %cst_15 : f32 to vector<1x16x32xf32>
    %17 = arith.cmpf ogt, %15, %16 : vector<1x16x32xf32>
    %cst_16 = arith.constant 0.00999999977 : f32
    %18 = vector.broadcast %cst_16 : f32 to vector<1x16x32xf32>
    %19 = arith.mulf %18, %15 : vector<1x16x32xf32>
    %20 = arith.select %17, %15, %19 : vector<1x16x32xi1>, vector<1x16x32xf32>
    %c0_17 = arith.constant 0 : index
    %c0_18 = arith.constant 0 : index
    %c0_19 = arith.constant 0 : index
    %21 = vector.load %arg5[%c0_17, %c0_18, %c0_19] : memref<1x16x32xf32, #tpu.memory_space<vmem>>, vector<1x16x32xf32>
    tpu.vector_store %arg5[%c0_17, %c0_18, %c0_19], %20 {strides = array<i32>} : memref<1x16x32xf32, #tpu.memory_space<vmem>>, vector<1x16x32xf32>,
    return
  }
  func.func @transform_0(%arg0: i32) -> (i32, i32, i32) {
    %c0_i32 = arith.constant 0 : i32
    %c0_i32_0 = arith.constant 0 : i32
    %c0_i32_1 = arith.constant 0 : i32
    return %arg0, %c0_i32, %c0_i32_0 : i32, i32, i32
  }
  func.func @transform_1(%arg0: i32) -> (i32, i32, i32) {
    %c0_i32 = arith.constant 0 : i32
    %c0_i32_0 = arith.constant 0 : i32
    %c0_i32_1 = arith.constant 0 : i32
    return %arg0, %c0_i32, %c0_i32_0 : i32, i32, i32
  }
  func.func @transform_2(%arg0: i32) -> (i32, i32, i32) {
    %c0_i32 = arith.constant 0 : i32
    %c0_i32_0 = arith.constant 0 : i32
    %c0_i32_1 = arith.constant 0 : i32
    %c0_i32_2 = arith.constant 0 : i32
    return %c0_i32, %c0_i32_0, %c0_i32_1 : i32, i32, i32
  }
  func.func @transform_3(%arg0: i32) -> (i32, i32) {
    %c0_i32 = arith.constant 0 : i32
    %c0_i32_0 = arith.constant 0 : i32
    %c0_i32_1 = arith.constant 0 : i32
    return %c0_i32, %c0_i32_0 : i32, i32
  }
  func.func @transform_4(%arg0: i32) -> (i32, i32, i32) {
    %c0_i32 = arith.constant 0 : i32
    %c0_i32_0 = arith.constant 0 : i32
    %c0_i32_1 = arith.constant 0 : i32
    return %arg0, %c0_i32, %c0_i32_0 : i32, i32, i32
  }
}

module attributes {stable_mosaic.version = 11 : i64} {
  func.func @_mpnn_kernel(%arg0: i32, %arg1: memref<1x16x32xf32, #tpu.memory_space<vmem>>, %arg2: memref<1x16x16xf32, #tpu.memory_space<vmem>>, %arg3: memref<2x32x32xf32, #tpu.memory_space<vmem>>, %arg4: memref<1x32xf32, #tpu.memory_space<vmem>>, %arg5: memref<1x16x32xf32, #tpu.memory_space<vmem>>) attributes {dimension_semantics = [#tpu.dimension_semantics<parallel>], iteration_bounds = array<i64: 2>, scalar_prefetch = 0 : i64, scratch_operands = 0 : i64, tpu.core_type = #tpu.core_type<tc>, window_params = [{transform_indices = @transform_0, window_bounds = array<i64: 1, 16, 32>}, {transform_indices = @transform_1, window_bounds = array<i64: 1, 16, 16>}, {pipeline_mode = #tpu.pipeline_mode<synchronous>, transform_indices = @transform_2, window_bounds = array<i64: 2, 32, 32>}, {pipeline_mode = #tpu.pipeline_mode<synchronous>, transform_indices = @transform_3, window_bounds = array<i64: 1, 32>}, {transform_indices = @transform_4, window_bounds = array<i64: 1, 16, 32>}]} {
    %c0 = arith.constant 0 : index
    %c0_0 = arith.constant 0 : index
    %c0_1 = arith.constant 0 : index
    %0 = vector.load %arg1[%c0, %c0_0, %c0_1] : memref<1x16x32xf32, #tpu.memory_space<vmem>>, vector<1x16x32xf32>
    %c0_2 = arith.constant 0 : index
    %c0_3 = arith.constant 0 : index
    %c0_4 = arith.constant 0 : index
    %1 = vector.load %arg2[%c0_2, %c0_3, %c0_4] : memref<1x16x16xf32, #tpu.memory_space<vmem>>, vector<1x16x16xf32>
    %c0_5 = arith.constant 0 : index
    %c0_6 = arith.constant 0 : index
    %2 = vector.load %arg4[%c0_5, %c0_6] : memref<1x32xf32, #tpu.memory_space<vmem>>, vector<1x32xf32>
    %3 = vector.shape_cast %2 : vector<1x32xf32> to vector<1x1x32xf32>
    %4 = vector.broadcast %3 : vector<1x1x32xf32> to vector<1x16x32xf32>
    %5 = arith.addf %0, %4 : vector<1x16x32xf32>
    "tpu.trace_start"() <{level = 10 : i32, message = "bij,bjd->bid"}> : () -> ()
    %cst = arith.constant dense<0.000000e+00> : vector<1x16x32xf32>
    %6 = tpu.matmul %1, %0, %cst {dimension_numbers = #tpu.dot_dimension_numbers<[2], [1], [1], [2], [0, 0, 0, 1, 1, 2], [0], [0]>} : vector<1x16x16xf32>, vector<1x16x32xf32>, vector<1x16x32xf32> -> vector<1x16x32xf32>
    "tpu.trace_stop"() : () -> ()
    %c0_7 = arith.constant 0 : index
    %c0_8 = arith.constant 0 : index
    %c0_9 = arith.constant 0 : index
    %7 = vector.load %arg3[%c0_7, %c0_8, %c0_9] : memref<2x32x32xf32, #tpu.memory_space<vmem>>, vector<1x32x32xf32>
    %8 = vector.shape_cast %7 : vector<1x32x32xf32> to vector<32x32xf32>
    "tpu.trace_start"() <{level = 10 : i32, message = "bnd,de->bne"}> : () -> ()
    %cst_10 = arith.constant dense<0.000000e+00> : vector<1x16x32xf32>
    %9 = tpu.matmul %6, %8, %cst_10 {dimension_numbers = #tpu.dot_dimension_numbers<[2], [0], [0, 1], [1], [0, 0, 0, 1, 1, 1], [], []>} : vector<1x16x32xf32>, vector<32x32xf32>, vector<1x16x32xf32> -> vector<1x16x32xf32>
    "tpu.trace_stop"() : () -> ()
    %10 = arith.addf %5, %9 : vector<1x16x32xf32>
    "tpu.trace_start"() <{level = 10 : i32, message = "bij,bjd->bid"}> : () -> ()
    %cst_11 = arith.constant dense<0.000000e+00> : vector<1x16x32xf32>
    %11 = tpu.matmul %1, %6, %cst_11 {dimension_numbers = #tpu.dot_dimension_numbers<[2], [1], [1], [2], [0, 0, 0, 1, 1, 2], [0], [0]>} : vector<1x16x16xf32>, vector<1x16x32xf32>, vector<1x16x32xf32> -> vector<1x16x32xf32>
    "tpu.trace_stop"() : () -> ()
    %c1 = arith.constant 1 : index
    %c0_12 = arith.constant 0 : index
    %c0_13 = arith.constant 0 : index
    %12 = vector.load %arg3[%c1, %c0_12, %c0_13] : memref<2x32x32xf32, #tpu.memory_space<vmem>>, vector<1x32x32xf32>
    %13 = vector.shape_cast %12 : vector<1x32x32xf32> to vector<32x32xf32>
    "tpu.trace_start"() <{level = 10 : i32, message = "bnd,de->bne"}> : () -> ()
    %cst_14 = arith.constant dense<0.000000e+00> : vector<1x16x32xf32>
    %14 = tpu.matmul %11, %13, %cst_14 {dimension_numbers = #tpu.dot_dimension_numbers<[2], [0], [0, 1], [1], [0, 0, 0, 1, 1, 1], [], []>} : vector<1x16x32xf32>, vector<32x32xf32>, vector<1x16x32xf32> -> vector<1x16x32xf32>
    "tpu.trace_stop"() : () -> ()
    %15 = arith.addf %10, %14 : vector<1x16x32xf32>
    %cst_15 = arith.constant 0.000000e+00 : f32
    %16 = vector.broadcast %cst_15 : f32 to vector<1x16x32xf32>
    %17 = arith.cmpf ogt, %15, %16 : vector<1x16x32xf32>
    %cst_16 = arith.constant 0.00999999977 : f32
    %18 = vector.broadcast %cst_16 : f32 to vector<1x16x32xf32>
    %19 = arith.mulf %18, %15 : vector<1x16x32xf32>
    %20 = arith.select %17, %15, %19 : vector<1x16x32xi1>, vector<1x16x32xf32>
    %c0_17 = arith.constant 0 : index
    %c0_18 = arith.constant 0 : index
    %c0_19 = arith.constant 0 : index
    %21 = vector.load %arg5[%c0_17, %c0_18, %c0_19] : memref<1x16x32xf32, #tpu.memory_space<vmem>>, vector<1x16x32xf32>
    tpu.vector_store %arg5[%c0_17, %c0_18, %c0_19], %20 {strides = array<i32>} : memref<1x16x32xf32, #tpu.memory_space<vmem>>, vector<1x16x32xf32>,
    return
  }
  func.func @transform_0(%arg0: i32) -> (i32, i32, i32) {
    %c0_i32 = arith.constant 0 : i32
    %c0_i32_0 = arith.constant 0 : i32
    %c0_i32_1 = arith.constant 0 : i32
    return %arg0, %c0_i32, %c0_i32_0 : i32, i32, i32
  }
  func.func @transform_1(%arg0: i32) -> (i32, i32, i32) {
    %c0_i32 = arith.constant 0 : i32
    %c0_i32_0 = arith.constant 0 : i32
    %c0_i32_1 = arith.constant 0 : i32
    return %arg0, %c0_i32, %c0_i32_0 : i32, i32, i32
  }
  func.func @transform_2(%arg0: i32) -> (i32, i32, i32) {
    %c0_i32 = arith.constant 0 : i32
    %c0_i32_0 = arith.constant 0 : i32
    %c0_i32_1 = arith.constant 0 : i32
    %c0_i32_2 = arith.constant 0 : i32
    return %c0_i32, %c0_i32_0, %c0_i32_1 : i32, i32, i32
  }
  func.func @transform_3(%arg0: i32) -> (i32, i32) {
    %c0_i32 = arith.constant 0 : i32
    %c0_i32_0 = arith.constant 0 : i32
    %c0_i32_1 = arith.constant 0 : i32
    return %c0_i32, %c0_i32_0 : i32, i32
  }
  func.func @transform_4(%arg0: i32) -> (i32, i32, i32) {
    %c0_i32 = arith.constant 0 : i32
    %c0_i32_0 = arith.constant 0 : i32
    %c0_i32_1 = arith.constant 0 : i32
    return %arg0, %c0_i32, %c0_i32_0 : i32, i32, i32
  }
}

</mosaic_0001>

<llo_original>
// kernel: tpu_custom_call.1
$region0: #{tpu_custom_call.1}
  #allocation0 [shape = 'u32[]', space=smem, size = 0x4, offset = 0x4, fixed_abs, tag = 'smem constant byte address 0x4 - core index']
  #allocation1 [shape = 'u32[72,128]{1,0:T(1,128)}', space=vmem, size = 0x9000, scoped, tag = 'internal scratch']
  %s0 = inlined_call_operand.hbm [shape: f32[2,16,32], index: 0, kind: input, shape index: {}]
  %s1 = inlined_call_operand.hbm [shape: f32[2,16,16], index: 1, kind: input, shape index: {}]
  %s2 = inlined_call_operand.hbm [shape: f32[2,32,32], index: 2, kind: input, shape index: {}]
  %s3 = inlined_call_operand.vmem [shape: f32[1,32], index: 3, kind: input, shape index: {}]
  %s4 = inlined_call_operand.hbm [shape: f32[2,16,32], index: 4, kind: output, shape index: {}]
  %s5 = sld [smem:[#allocation0]]
  $region61: #{tpu_custom_call.1} parent=0
    _
  %s7 = ssub.s32 1, %s5
  %s8 = scalar_select 0, %s7, %s5
  $region1: #{tpu_custom_call.1} parent=0
    #allocation2 [shape = 'u8[16384]{0}', space=vmem, size = 0x4000, scoped, tag = 'input window, operand 0']
    #allocation3 [shape = 's32[2]{0}', space=sflag, size = 0x8, scoped, tag = 'scoped memory for tpu_custom_call.1']
    #allocation4 [shape = 's32[2]{0}', space=sflag, size = 0x8, scoped, tag = 'scoped memory for tpu_custom_call.1']
    #allocation5 [shape = 'u8[16384]{0}', space=vmem, size = 0x4000, scoped, tag = 'input window, operand 1']
    #allocation6 [shape = 's32[2]{0}', space=sflag, size = 0x8, scoped, tag = 'scoped memory for tpu_custom_call.1']
    #allocation7 [shape = 'u8[32768]{0}', space=vmem, size = 0x8000, scoped, tag = 'input window, operand 2, single buffered']
    #allocation8 [shape = 'u8[16384]{0}', space=vmem, size = 0x4000, scoped, tag = 'output window, operand 0']
    %9 = vsyncpa [#allocation3], 0
    %s10 = scalar_lea.sflag [#allocation3], 1
    %11 = vsyncpa %s10, 0
    %12 = vsyncpa [#allocation6], 0
    %s13 = scalar_lea.sflag [#allocation6], 1
    %14 = vsyncpa %s13, 0
    %15 = vsyncpa [#allocation4], 0
    %s16 = scalar_lea.sflag [#allocation4], 1
    %17 = vsyncpa %s16, 0
    loop: start=0, step=1, limit=4
    $region2: #{tpu_custom_call.1} parent=1 // loop_pre_header
      _
    $region3: #{tpu_custom_call.1} parent=1 // loop_header
      %s19 = sphi 0, %s23
      %p20 = scmp.ge.s32.totalorder %s19, 4
      %s29 = sphi 0, %s31
      %s32 = sphi 0, %s29
      %s33 = sphi 0, %s32
      %s49 = sphi 0, %s33
      %s55 = sphi 0, %s57
      %s58 = sphi 0, %s55
      %s59 = sphi 0, %s58
      %s75 = sphi 0, %s59
      %s79 = sphi 0, %s79
      %s81 = sphi 0, %s79
      %s82 = sphi 0, %s81
      %s96 = sphi 0, %s82
      %s100 = sphi 0, %s100
      %s102 = sphi 0, %s100
      %s103 = sphi 0, %s102
      %s117 = sphi 0, %s103
      %s123 = sphi 0, %s125
      %s126 = sphi 0, %s123
      %s127 = sphi 0, %s126
      %s143 = sphi 0, %s127
    $region4: #{tpu_custom_call.1} parent=1 // loop_header_branch
      %22 = sbr.rel (%p20) target = $region8
    $region5: #{tpu_custom_call.1} parent=1 // loop_body
      %s24 = ssub.s32 %s19, 1
      %s25 = ssub.s32 %s19, 2
      %s26 = sadd.s32 %s19, 1
      %s27 = ssub.s32 %s19, %s26
      %p28 = scmp.eq.s32.totalorder %s27, 0
      %s30 = sadd.s32 %s29, 1
      %s31 = scalar_select %p28, %s29, %s30
      %p34 = pneg %p28
      %p35 = scmp.eq.s32.totalorder %s19, 1
      %p36 = por %p34, %p35
      %p37 = scmp.ne.s32.totalorder %s29, %s32
      %p38 = scmp.eq.s32.totalorder %s19, 0
      %p39 = por %p37, %p38
      %p40 = scmp.ne.s32.totalorder %s29, %s32
      %p41 = scmp.eq.s32.totalorder %s24, 1
      %p42 = por %p40, %p41
      %p43 = scmp.ne.s32.totalorder %s32, %s33
      %p44 = scmp.eq.s32.totalorder %s24, 0
      %p45 = por %p43, %p44
      %p46 = scmp.ne.s32.totalorder %s32, %s33
      %p47 = scmp.eq.s32.totalorder %s25, 1
      %p48 = por %p46, %p47
      %p50 = scmp.ne.s32.totalorder %s33, %s49
      %p51 = scmp.eq.s32.totalorder %s25, 0
      %p52 = por %p50, %p51
      %s53 = ssub.s32 %s19, %s26
      %p54 = scmp.eq.s32.totalorder %s53, 0
      %s56 = sadd.s32 %s55, 1
      %s57 = scalar_select %p54, %s55, %s56
      %p60 = pneg %p54
      %p61 = scmp.eq.s32.totalorder %s19, 1
      %p62 = por %p60, %p61
      %p63 = scmp.ne.s32.totalorder %s55, %s58
      %p64 = scmp.eq.s32.totalorder %s19, 0
      %p65 = por %p63, %p64
      %p66 = scmp.ne.s32.totalorder %s55, %s58
      %p67 = scmp.eq.s32.totalorder %s24, 1
      %p68 = por %p66, %p67
      %p69 = scmp.ne.s32.totalorder %s58, %s59
      %p70 = scmp.eq.s32.totalorder %s24, 0
      %p71 = por %p69, %p70
      %p72 = scmp.ne.s32.totalorder %s58, %s59
      %p73 = scmp.eq.s32.totalorder %s25, 1
      %p74 = por %p72, %p73
      %p76 = scmp.ne.s32.totalorder %s59, %s75
      %p77 = scmp.eq.s32.totalorder %s25, 0
      %p78 = por %p76, %p77
      %s80 = sadd.s32 %s79, 1
      %p83 = scmp.eq.s32.totalorder %s19, 1
      %p84 = scmp.ne.s32.totalorder %s79, %s81
      %p85 = scmp.eq.s32.totalorder %s19, 0
      %p86 = por %p84, %p85
      %p87 = scmp.ne.s32.totalorder %s79, %s81
      %p88 = scmp.eq.s32.totalorder %s24, 1
      %p89 = por %p87, %p88
      %p90 = scmp.ne.s32.totalorder %s81, %s82
      %p91 = scmp.eq.s32.totalorder %s24, 0
      %p92 = por %p90, %p91
      %p93 = scmp.ne.s32.totalorder %s81, %s82
      %p94 = scmp.eq.s32.totalorder %s25, 1
      %p95 = por %p93, %p94
      %p97 = scmp.ne.s32.totalorder %s82, %s96
      %p98 = scmp.eq.s32.totalorder %s25, 0
      %p99 = por %p97, %p98
      %s101 = sadd.s32 %s100, 1
      %p104 = scmp.eq.s32.totalorder %s19, 1
      %p105 = scmp.ne.s32.totalorder %s100, %s102
      %p106 = scmp.eq.s32.totalorder %s19, 0
      %p107 = por %p105, %p106
      %p108 = scmp.ne.s32.totalorder %s100, %s102
      %p109 = scmp.eq.s32.totalorder %s24, 1
      %p110 = por %p108, %p109
      %p111 = scmp.ne.s32.totalorder %s102, %s103
      %p112 = scmp.eq.s32.totalorder %s24, 0
      %p113 = por %p111, %p112
      %p114 = scmp.ne.s32.totalorder %s102, %s103
      %p115 = scmp.eq.s32.totalorder %s25, 1
      %p116 = por %p114, %p115
      %p118 = scmp.ne.s32.totalorder %s103, %s117
      %p119 = scmp.eq.s32.totalorder %s25, 0
      %p120 = por %p118, %p119
      %s121 = ssub.s32 %s19, %s26
      %p122 = scmp.eq.s32.totalorder %s121, 0
      %s124 = sadd.s32 %s123, 1
      %s125 = scalar_select %p122, %s123, %s124
      %p128 = pneg %p122
      %p129 = scmp.eq.s32.totalorder %s19, 1
      %p130 = por %p128, %p129
      %p131 = scmp.ne.s32.totalorder %s123, %s126
      %p132 = scmp.eq.s32.totalorder %s19, 0
      %p133 = por %p131, %p132
      %p134 = scmp.ne.s32.totalorder %s123, %s126
      %p135 = scmp.eq.s32.totalorder %s24, 1
      %p136 = por %p134, %p135
      %p137 = scmp.ne.s32.totalorder %s126, %s127
      %p138 = scmp.eq.s32.totalorder %s24, 0
      %p139 = por %p137, %p138
      %p140 = scmp.ne.s32.totalorder %s126, %s127
      %p141 = scmp.eq.s32.totalorder %s25, 1
      %p142 = por %p140, %p141
      %p144 = scmp.ne.s32.totalorder %s127, %s143
      %p145 = scmp.eq.s32.totalorder %s25, 0
      %p146 = por %p144, %p145
      %p147 = scmp.le.s32.totalorder 1, %s19
      %p148 = scmp.lt.s32.totalorder %s19, 3
      %p149 = pnand %p147, %p148
      %p150 = pneg %p149
      // Predicated region
      $region9: #{tpu_custom_call.1} parent=5 // pred_check
        _
      $region10: #{tpu_custom_call.1} parent=5 // pred_check_branch
        %152 = sbr.rel (%p149) target = $region12
      $region11: #{tpu_custom_call.1} parent=5 // pred_region
        %s153 = ssub.s32 %s19, 1
        // Predicated region
        $region13: #{tpu_custom_call.1} parent=11 // pred_check
          %p154 = pneg %p92
        $region14: #{tpu_custom_call.1} parent=11 // pred_check_branch
          %156 = sbr.rel (%p154) target = $region16
        $region15: #{tpu_custom_call.1} parent=11 // pred_region
          %158 = vsyncadd [#allocation6], 0
          %s159 = sshll.u32 %s2, 4
          %s160 = int_to_ptr.hbm [resolvable:$true] %s159
          %s161 = sshll.u32 [#allocation7], 4
          %s162 = int_to_ptr.vmem [resolvable:$true] %s161
          %167 = dma.hbm_to_vmem [thread:$0]  %s160, 1024, %s162, [#allocation6], 128, 128, 8
        $region16: #{tpu_custom_call.1} parent=11 // pred_fallthru
          _
        // Predicated region
        $region17: #{tpu_custom_call.1} parent=11 // pred_check
          %p168 = pneg %p113
        $region18: #{tpu_custom_call.1} parent=11 // pred_check_branch
          %170 = sbr.rel (%p168) target = $region20
        $region19: #{tpu_custom_call.1} parent=11 // pred_region
          _
        $region20: #{tpu_custom_call.1} parent=11 // pred_fallthru
          _
      $region12: #{tpu_custom_call.1} parent=5 // pred_fallthru
        _
      %p171 = scmp.lt.s32.totalorder %s19, 2
      // Predicated region
      $region21: #{tpu_custom_call.1} parent=5 // pred_check
        %p172 = pneg %p171
      $region22: #{tpu_custom_call.1} parent=5 // pred_check_branch
        %174 = sbr.rel (%p172) target = $region24
      $region23: #{tpu_custom_call.1} parent=5 // pred_region
        // Predicated region
        $region25: #{tpu_custom_call.1} parent=23 // pred_check
          %p175 = pneg %p39
        $region26: #{tpu_custom_call.1} parent=23 // pred_check_branch
          %177 = sbr.rel (%p175) target = $region28
        $region27: #{tpu_custom_call.1} parent=23 // pred_region
          %s178 = sand.u32 %s29, 1
          %s179 = scalar_lea.sflag [#allocation3], %s178
          %s180 = sand.u32 %s29, 1
          %s181 = smul.addr %s180, 16
          %s182 = scalar_lea.vmem [#allocation2], %s181
          %184 = vsyncadd %s179, 0
          %s185 = smul.addr %s19, 2
          %s186 = smul.addr %s185, 8
          %s187 = scalar_lea.hbm %s0, %s186
          %s188 = sshll.u32 %s187, 4
          %s189 = int_to_ptr.hbm [resolvable:$true] %s188
          %s190 = sshll.u32 %s182, 4
          %s191 = int_to_ptr.vmem [resolvable:$true] %s190
          %196 = dma.hbm_to_vmem [thread:$0]  %s189, 256, %s191, %s179, 128, 128, 8
        $region28: #{tpu_custom_call.1} parent=23 // pred_fallthru
          _
        // Predicated region
        $region29: #{tpu_custom_call.1} parent=23 // pred_check
          %p197 = pneg %p65
        $region30: #{tpu_custom_call.1} parent=23 // pred_check_branch
          %199 = sbr.rel (%p197) target = $region32
        $region31: #{tpu_custom_call.1} parent=23 // pred_region
          %s200 = sand.u32 %s19, 1
          %s201 = scalar_lea.sflag [#allocation6], %s200
          %s202 = sand.u32 %s55, 1
          %s203 = smul.addr %s202, 16
          %s204 = scalar_lea.vmem [#allocation5], %s203
          %206 = vsyncadd %s201, 0
          %s207 = smul.addr %s19, 2
          %s208 = smul.addr %s207, 8
          %s209 = scalar_lea.hbm %s1, %s208
          %s210 = sshll.u32 %s209, 4
          %s211 = int_to_ptr.hbm [resolvable:$true] %s210
          %s212 = sshll.u32 %s204, 4
          %s213 = int_to_ptr.vmem [resolvable:$true] %s212
          %218 = dma.hbm_to_vmem [thread:$0]  %s211, 256, %s213, %s201, 128, 128, 8
        $region32: #{tpu_custom_call.1} parent=23 // pred_fallthru
          _
      $region24: #{tpu_custom_call.1} parent=5 // pred_fallthru
        _
      %p219 = scmp.le.s32.totalorder 1, %s19
      %p220 = scmp.lt.s32.totalorder %s19, 3
      %p221 = pnand %p219, %p220
      %p222 = pneg %p221
      // Predicated region
      $region33: #{tpu_custom_call.1} parent=5 // pred_check
        _
      $region34: #{tpu_custom_call.1} parent=5 // pred_check_branch
        %224 = sbr.rel (%p221) target = $region36
      $region35: #{tpu_custom_call.1} parent=5 // pred_region
        %s225 = ssub.s32 %s19, 1
        %s226 = sand.u32 %s32, 1
        %s227 = scalar_lea.sflag [#allocation3], %s226
        %s228 = sand.u32 %s32, 1
        %s229 = smul.addr %s228, 16
        %s230 = scalar_lea.vmem [#allocation2], %s229
        // Predicated region
        $region37: #{tpu_custom_call.1} parent=35 // pred_check
          %p231 = pneg %p45
        $region38: #{tpu_custom_call.1} parent=35 // pred_check_branch
          %233 = sbr.rel (%p231) target = $region40
        $region39: #{tpu_custom_call.1} parent=35 // pred_region
          %235 = dma.done %s227, 256
        $region40: #{tpu_custom_call.1} parent=35 // pred_fallthru
          _
        %s236 = sand.u32 %s24, 1
        %s237 = scalar_lea.sflag [#allocation6], %s236
        %s238 = sand.u32 %s58, 1
        %s239 = smul.addr %s238, 16
        %s240 = scalar_lea.vmem [#allocation5], %s239
        // Predicated region
        $region41: #{tpu_custom_call.1} parent=35 // pred_check
          %p241 = pneg %p71
        $region42: #{tpu_custom_call.1} parent=35 // pred_check_branch
          %243 = sbr.rel (%p241) target = $region44
        $region43: #{tpu_custom_call.1} parent=35 // pred_region
          %245 = dma.done %s237, 256
        $region44: #{tpu_custom_call.1} parent=35 // pred_fallthru
          _
        // Predicated region
        $region45: #{tpu_custom_call.1} parent=35 // pred_check
          %p246 = pneg %p92
        $region46: #{tpu_custom_call.1} parent=35 // pred_check_branch
          %248 = sbr.rel (%p246) target = $region48
        $region47: #{tpu_custom_call.1} parent=35 // pred_region
          %250 = dma.done [#allocation6], 1024
        $region48: #{tpu_custom_call.1} parent=35 // pred_fallthru
          _
        %s251 = sand.u32 %s32, 1
        %s252 = scalar_lea.sflag [#allocation3], %s251
        %s253 = sand.u32 %s32, 1
        %s254 = smul.addr %s253, 16
        %s255 = scalar_lea.vmem [#allocation2], %s254
        %p256 = pneg %p45
        %p257 = pneg %p42
        %s258 = sand.u32 %s24, 1
        %s259 = scalar_lea.sflag [#allocation6], %s258
        %s260 = sand.u32 %s58, 1
        %s261 = smul.addr %s260, 16
        %s262 = scalar_lea.vmem [#allocation5], %s261
        %p263 = pneg %p71
        %p264 = pneg %p68
        %p265 = pneg %p92
        %p266 = pneg %p89
        %p267 = pneg %p113
        %p268 = pneg %p110
        %p269 = pneg %p139
        %p270 = pneg %p136
        %s271 = sand.u32 %s126, 1
        %s272 = scalar_lea.sflag [#allocation4], %s271
        %s273 = sand.u32 %s126, 1
        %s274 = smul.addr %s273, 16
        %s275 = scalar_lea.vmem [#allocation8], %s274
        %v276 = vld [vmem:[%s230] sm:$0xff]
        %v277 = vld [vmem:[%s230 + $0x8] sm:$0xff]
        %v278 = vld [vmem:[%s240] sm:$0xff]
        %v279 = vld [vmem:[%s240 + $0x8] sm:$0xff]
        %v280 = vld [vmem:[%s3] sm:$0x1]
        %v282 = vperm.slane %v280, 0
        %v284 = vadd.f32 %v276, %v282
        %v285 = vadd.f32 %v277, %v282
        %vm286 = vcmask 130048
        %v288 = vsel %vm286, %v278, 0
        %v291 = vsel %vm286, %v279, 0
        %293 = vmatpush.msra.mxu0 0.0
        %294 = vmatpush.msra.mxu0 0.0
        %295 = vmatpush.msra.mxu0 0.0
        %296 = vmatpush.msra.mxu0 0.0
        %297 = vmatpush.msra.mxu0 0.0
        %298 = vmatpush.msra.mxu0 0.0
        %299 = vmatpush.msra.mxu0 0.0
        %300 = vmatpush.msra.mxu0 0.0
        %301 = vmatpush.msra.mxu0 0.0
        %302 = vmatpush.msra.mxu0 0.0
        %303 = vmatpush.msra.mxu0 0.0
        %304 = vmatpush.msra.mxu0 0.0
        %305 = vmatpush.msra.mxu0 0.0
        %306 = vmatpush.msra.mxu0 0.0
        %307 = vmatpush.msra.mxu0 %v277
        %308 = vmatpush.msra.mxu0 %v276
        %309 = vmatmul.f32.gmra.mxu0 %v288
        %v310 = vpop.f32.mrf.mxu0
        %v311 = vadd.f32 0.0, %v310
        %312 = vmatmul.f32.gmra.mxu0 %v291
        %v313 = vpop.f32.mrf.mxu0
        %v314 = vadd.f32 0.0, %v313
        %315 = vdwg.mxu0
        %v316 = vld [vmem:[#allocation7] sm:$0xff]
        %v317 = vld [vmem:[#allocation7 + $0x8] sm:$0xff]
        %v318 = vld [vmem:[#allocation7 + $0x10] sm:$0xff]
        %v319 = vld [vmem:[#allocation7 + $0x18] sm:$0xff]
        %vm320 = vcmask 261120
        %v322 = vsel %vm320, %v311, 0
        %v325 = vsel %vm320, %v314, 0
        %327 = vmatpush.msra.mxu0 0.0
        %328 = vmatpush.msra.mxu0 0.0
        %329 = vmatpush.msra.mxu0 0.0
        %330 = vmatpush.msra.mxu0 0.0
        %331 = vmatpush.msra.mxu0 0.0
        %332 = vmatpush.msra.mxu0 0.0
        %333 = vmatpush.msra.mxu0 0.0
        %334 = vmatpush.msra.mxu0 0.0
        %335 = vmatpush.msra.mxu0 0.0
        %336 = vmatpush.msra.mxu0 0.0
        %337 = vmatpush.msra.mxu0 0.0
        %338 = vmatpush.msra.mxu0 0.0
        %339 = vmatpush.msra.mxu0 %v319
        %340 = vmatpush.msra.mxu0 %v318
        %341 = vmatpush.msra.mxu0 %v317
        %342 = vmatpush.msra.mxu0 %v316
        %343 = vmatmul.f32.gmra.mxu0 %v322
        %v344 = vpop.f32.mrf.mxu0
        %v345 = vadd.f32 0.0, %v344
        %346 = vmatmul.f32.gmra.mxu0 %v325
        %v347 = vpop.f32.mrf.mxu0
        %v348 = vadd.f32 0.0, %v347
        %349 = vdwg.mxu0
        %v350 = vadd.f32 %v284, %v345
        %v351 = vadd.f32 %v285, %v348
        %352 = vmatpush.msra.mxu0 0.0
        %353 = vmatpush.msra.mxu0 0.0
        %354 = vmatpush.msra.mxu0 0.0
        %355 = vmatpush.msra.mxu0 0.0
        %356 = vmatpush.msra.mxu0 0.0
        %357 = vmatpush.msra.mxu0 0.0
        %358 = vmatpush.msra.mxu0 0.0
        %359 = vmatpush.msra.mxu0 0.0
        %360 = vmatpush.msra.mxu0 0.0
        %361 = vmatpush.msra.mxu0 0.0
        %362 = vmatpush.msra.mxu0 0.0
        %363 = vmatpush.msra.mxu0 0.0
        %364 = vmatpush.msra.mxu0 0.0
        %365 = vmatpush.msra.mxu0 0.0
        %366 = vmatpush.msra.mxu0 %v314
        %367 = vmatpush.msra.mxu0 %v311
        %368 = vmatmul.f32.gmra.mxu0 %v288
        %v369 = vpop.f32.mrf.mxu0
        %v370 = vadd.f32 0.0, %v369
        %371 = vmatmul.f32.gmra.mxu0 %v291
        %v372 = vpop.f32.mrf.mxu0
        %v373 = vadd.f32 0.0, %v372
        %374 = vdwg.mxu0
        %s375 = scalar_lea.vmem [#allocation7], 32
        %v376 = vld [vmem:[%s375] sm:$0xff]
        %v377 = vld [vmem:[%s375 + $0x8] sm:$0xff]
        %v378 = vld [vmem:[%s375 + $0x10] sm:$0xff]
        %v379 = vld [vmem:[%s375 + $0x18] sm:$0xff]
        %v381 = vsel %vm320, %v370, 0
        %v384 = vsel %vm320, %v373, 0
        %386 = vmatpush.msra.mxu0 0.0
        %387 = vmatpush.msra.mxu0 0.0
        %388 = vmatpush.msra.mxu0 0.0
        %389 = vmatpush.msra.mxu0 0.0
        %390 = vmatpush.msra.mxu0 0.0
        %391 = vmatpush.msra.mxu0 0.0
        %392 = vmatpush.msra.mxu0 0.0
        %393 = vmatpush.msra.mxu0 0.0
        %394 = vmatpush.msra.mxu0 0.0
        %395 = vmatpush.msra.mxu0 0.0
        %396 = vmatpush.msra.mxu0 0.0
        %397 = vmatpush.msra.mxu0 0.0
        %398 = vmatpush.msra.mxu0 %v379
        %399 = vmatpush.msra.mxu0 %v378
        %400 = vmatpush.msra.mxu0 %v377
        %401 = vmatpush.msra.mxu0 %v376
        %402 = vmatmul.f32.gmra.mxu0 %v381
        %v403 = vpop.f32.mrf.mxu0
        %v404 = vadd.f32 0.0, %v403
        %405 = vmatmul.f32.gmra.mxu0 %v384
        %v406 = vpop.f32.mrf.mxu0
        %v407 = vadd.f32 0.0, %v406
        %408 = vdwg.mxu0
        %v409 = vadd.f32 %v350, %v404
        %v410 = vadd.f32 %v351, %v407
        %vm411 = vcmp.gt.f32.partialorder %v409, 0.0
        %vm412 = vcmp.gt.f32.partialorder %v410, 0.0
        %v413 = vmul.f32 %v409, 0.01
        %v414 = vmul.f32 %v410, 0.01
        %v415 = vsel %vm411, %v409, %v413
        %v416 = vsel %vm412, %v410, %v414
        %417 = vst.msk [vmem:[%s275] sm:$0xff] %vm320, %v415
        %418 = vst.msk [vmem:[%s275 + $0x8] sm:$0xff] %vm320, %v416
        %s419 = sand.u32 %s126, 1
        %s420 = scalar_lea.sflag [#allocation4], %s419
        %s421 = sand.u32 %s126, 1
        %s422 = smul.addr %s421, 16
        %s423 = scalar_lea.vmem [#allocation8], %s422
        // Predicated region
        $region49: #{tpu_custom_call.1} parent=35 // pred_check
          %p424 = pneg %p136
        $region50: #{tpu_custom_call.1} parent=35 // pred_check_branch
          %426 = sbr.rel (%p424) target = $region52
        $region51: #{tpu_custom_call.1} parent=35 // pred_region
          %428 = vsyncadd %s420, 0
          %s429 = smul.addr %s24, 2
          %s430 = smul.addr %s429, 8
          %s431 = scalar_lea.hbm %s4, %s430
          %s432 = sshll.u32 %s423, 4
          %s433 = int_to_ptr.vmem [resolvable:$true] %s432
          %s434 = sshll.u32 %s431, 4
          %s435 = int_to_ptr.hbm [resolvable:$true] %s434
          %440 = dma.vmem_to_hbm [thread:$0]  %s433, 256, %s435, %s420, 128, 128, 8
        $region52: #{tpu_custom_call.1} parent=35 // pred_fallthru
          _
      $region36: #{tpu_custom_call.1} parent=5 // pred_fallthru
        _
      %p441 = scmp.le.s32.totalorder 2, %s19
      // Predicated region
      $region53: #{tpu_custom_call.1} parent=5 // pred_check
        %p442 = pneg %p441
      $region54: #{tpu_custom_call.1} parent=5 // pred_check_branch
        %444 = sbr.rel (%p442) target = $region56
      $region55: #{tpu_custom_call.1} parent=5 // pred_region
        %s445 = ssub.s32 %s19, 2
        // Predicated region
        $region57: #{tpu_custom_call.1} parent=55 // pred_check
          %p446 = pneg %p142
        $region58: #{tpu_custom_call.1} parent=55 // pred_check_branch
          %448 = sbr.rel (%p446) target = $region60
        $region59: #{tpu_custom_call.1} parent=55 // pred_region
          %s449 = sand.u32 %s127, 1
          %s450 = scalar_lea.sflag [#allocation4], %s449
          %s451 = sand.u32 %s127, 1
          %s452 = smul.addr %s451, 16
          %s453 = scalar_lea.vmem [#allocation8], %s452
          %455 = dma.done %s450, 256
        $region60: #{tpu_custom_call.1} parent=55 // pred_fallthru
          _
      $region56: #{tpu_custom_call.1} parent=5 // pred_fallthru
        _
    $region6: #{tpu_custom_call.1} parent=1 // loop_footer
      %s23 = sadd.s32 1, %s19
    $region7: #{tpu_custom_call.1} parent=1 // loop_footer_branch
      %18 = sbr.rel target = $region3
    $region8: #{tpu_custom_call.1} parent=1 // loop_exit
      _
    %456 = vsyncpa [#allocation3], 1
    %s457 = scalar_lea.sflag [#allocation3], 1
    %458 = vsyncpa %s457, 1
    %459 = vsyncpa [#allocation6], 1
    %s460 = scalar_lea.sflag [#allocation6], 1
    %461 = vsyncpa %s460, 1
    %462 = vsyncpa [#allocation4], 1
    %s463 = scalar_lea.sflag [#allocation4], 1
    %464 = vsyncpa %s463, 1

// kernel: tpu_custom_call.1
$region0: #{tpu_custom_call.1}
  #allocation0 [shape = 'u32[]', space=smem, size = 0x4, offset = 0x4, fixed_abs, tag = 'smem constant byte address 0x4 - core index']
  #allocation1 [shape = 'u32[72,128]{1,0:T(1,128)}', space=vmem, size = 0x9000, scoped, tag = 'internal scratch']
  %s0 = inlined_call_operand.hbm [shape: f32[2,16,32], index: 0, kind: input, shape index: {}]
  %s1 = inlined_call_operand.hbm [shape: f32[2,16,16], index: 1, kind: input, shape index: {}]
  %s2 = inlined_call_operand.hbm [shape: f32[2,32,32], index: 2, kind: input, shape index: {}]
  %s3 = inlined_call_operand.vmem [shape: f32[1,32], index: 3, kind: input, shape index: {}]
  %s4 = inlined_call_operand.hbm [shape: f32[2,16,32], index: 4, kind: output, shape index: {}]
  %s5 = sld [smem:[#allocation0]]
  $region61: #{tpu_custom_call.1} parent=0
    _
  %s7 = ssub.s32 1, %s5
  %s8 = scalar_select 0, %s7, %s5
  $region1: #{tpu_custom_call.1} parent=0
    #allocation2 [shape = 'u8[16384]{0}', space=vmem, size = 0x4000, scoped, tag = 'input window, operand 0']
    #allocation3 [shape = 's32[2]{0}', space=sflag, size = 0x8, scoped, tag = 'scoped memory for tpu_custom_call.1']
    #allocation4 [shape = 's32[2]{0}', space=sflag, size = 0x8, scoped, tag = 'scoped memory for tpu_custom_call.1']
    #allocation5 [shape = 'u8[16384]{0}', space=vmem, size = 0x4000, scoped, tag = 'input window, operand 1']
    #allocation6 [shape = 's32[2]{0}', space=sflag, size = 0x8, scoped, tag = 'scoped memory for tpu_custom_call.1']
    #allocation7 [shape = 'u8[32768]{0}', space=vmem, size = 0x8000, scoped, tag = 'input window, operand 2, single buffered']
    #allocation8 [shape = 'u8[16384]{0}', space=vmem, size = 0x4000, scoped, tag = 'output window, operand 0']
    %9 = vsyncpa [#allocation3], 0
    %s10 = scalar_lea.sflag [#allocation3], 1
    %11 = vsyncpa %s10, 0
    %12 = vsyncpa [#allocation6], 0
    %s13 = scalar_lea.sflag [#allocation6], 1
    %14 = vsyncpa %s13, 0
    %15 = vsyncpa [#allocation4], 0
    %s16 = scalar_lea.sflag [#allocation4], 1
    %17 = vsyncpa %s16, 0
    loop: start=0, step=1, limit=4
    $region2: #{tpu_custom_call.1} parent=1 // loop_pre_header
      _
    $region3: #{tpu_custom_call.1} parent=1 // loop_header
      %s19 = sphi 0, %s23
      %p20 = scmp.ge.s32.totalorder %s19, 4
      %s29 = sphi 0, %s31
      %s32 = sphi 0, %s29
      %s33 = sphi 0, %s32
      %s49 = sphi 0, %s33
      %s55 = sphi 0, %s57
      %s58 = sphi 0, %s55
      %s59 = sphi 0, %s58
      %s75 = sphi 0, %s59
      %s79 = sphi 0, %s79
      %s81 = sphi 0, %s79
      %s82 = sphi 0, %s81
      %s96 = sphi 0, %s82
      %s100 = sphi 0, %s100
      %s102 = sphi 0, %s100
      %s103 = sphi 0, %s102
      %s117 = sphi 0, %s103
      %s123 = sphi 0, %s125
      %s126 = sphi 0, %s123
      %s127 = sphi 0, %s126
      %s143 = sphi 0, %s127
    $region4: #{tpu_custom_call.1} parent=1 // loop_header_branch
      %22 = sbr.rel (%p20) target = $region8
    $region5: #{tpu_custom_call.1} parent=1 // loop_body
      %s24 = ssub.s32 %s19, 1
      %s25 = ssub.s32 %s19, 2
      %s26 = sadd.s32 %s19, 1
      %s27 = ssub.s32 %s19, %s26
      %p28 = scmp.eq.s32.totalorder %s27, 0
      %s30 = sadd.s32 %s29, 1
      %s31 = scalar_select %p28, %s29, %s30
      %p34 = pneg %p28
      %p35 = scmp.eq.s32.totalorder %s19, 1
      %p36 = por %p34, %p35
      %p37 = scmp.ne.s32.totalorder %s29, %s32
      %p38 = scmp.eq.s32.totalorder %s19, 0
      %p39 = por %p37, %p38
      %p40 = scmp.ne.s32.totalorder %s29, %s32
      %p41 = scmp.eq.s32.totalorder %s24, 1
      %p42 = por %p40, %p41
      %p43 = scmp.ne.s32.totalorder %s32, %s33
      %p44 = scmp.eq.s32.totalorder %s24, 0
      %p45 = por %p43, %p44
      %p46 = scmp.ne.s32.totalorder %s32, %s33
      %p47 = scmp.eq.s32.totalorder %s25, 1
      %p48 = por %p46, %p47
      %p50 = scmp.ne.s32.totalorder %s33, %s49
      %p51 = scmp.eq.s32.totalorder %s25, 0
      %p52 = por %p50, %p51
      %s53 = ssub.s32 %s19, %s26
      %p54 = scmp.eq.s32.totalorder %s53, 0
      %s56 = sadd.s32 %s55, 1
      %s57 = scalar_select %p54, %s55, %s56
      %p60 = pneg %p54
      %p61 = scmp.eq.s32.totalorder %s19, 1
      %p62 = por %p60, %p61
      %p63 = scmp.ne.s32.totalorder %s55, %s58
      %p64 = scmp.eq.s32.totalorder %s19, 0
      %p65 = por %p63, %p64
      %p66 = scmp.ne.s32.totalorder %s55, %s58
      %p67 = scmp.eq.s32.totalorder %s24, 1
      %p68 = por %p66, %p67
      %p69 = scmp.ne.s32.totalorder %s58, %s59
      %p70 = scmp.eq.s32.totalorder %s24, 0
      %p71 = por %p69, %p70
      %p72 = scmp.ne.s32.totalorder %s58, %s59
      %p73 = scmp.eq.s32.totalorder %s25, 1
      %p74 = por %p72, %p73
      %p76 = scmp.ne.s32.totalorder %s59, %s75
      %p77 = scmp.eq.s32.totalorder %s25, 0
      %p78 = por %p76, %p77
      %s80 = sadd.s32 %s79, 1
      %p83 = scmp.eq.s32.totalorder %s19, 1
      %p84 = scmp.ne.s32.totalorder %s79, %s81
      %p85 = scmp.eq.s32.totalorder %s19, 0
      %p86 = por %p84, %p85
      %p87 = scmp.ne.s32.totalorder %s79, %s81
      %p88 = scmp.eq.s32.totalorder %s24, 1
      %p89 = por %p87, %p88
      %p90 = scmp.ne.s32.totalorder %s81, %s82
      %p91 = scmp.eq.s32.totalorder %s24, 0
      %p92 = por %p90, %p91
      %p93 = scmp.ne.s32.totalorder %s81, %s82
      %p94 = scmp.eq.s32.totalorder %s25, 1
      %p95 = por %p93, %p94
      %p97 = scmp.ne.s32.totalorder %s82, %s96
      %p98 = scmp.eq.s32.totalorder %s25, 0
      %p99 = por %p97, %p98
      %s101 = sadd.s32 %s100, 1
      %p104 = scmp.eq.s32.totalorder %s19, 1
      %p105 = scmp.ne.s32.totalorder %s100, %s102
      %p106 = scmp.eq.s32.totalorder %s19, 0
      %p107 = por %p105, %p106
      %p108 = scmp.ne.s32.totalorder %s100, %s102
      %p109 = scmp.eq.s32.totalorder %s24, 1
      %p110 = por %p108, %p109
      %p111 = scmp.ne.s32.totalorder %s102, %s103
      %p112 = scmp.eq.s32.totalorder %s24, 0
      %p113 = por %p111, %p112
      %p114 = scmp.ne.s32.totalorder %s102, %s103
      %p115 = scmp.eq.s32.totalorder %s25, 1
      %p116 = por %p114, %p115
      %p118 = scmp.ne.s32.totalorder %s103, %s117
      %p119 = scmp.eq.s32.totalorder %s25, 0
      %p120 = por %p118, %p119
      %s121 = ssub.s32 %s19, %s26
      %p122 = scmp.eq.s32.totalorder %s121, 0
      %s124 = sadd.s32 %s123, 1
      %s125 = scalar_select %p122, %s123, %s124
      %p128 = pneg %p122
      %p129 = scmp.eq.s32.totalorder %s19, 1
      %p130 = por %p128, %p129
      %p131 = scmp.ne.s32.totalorder %s123, %s126
      %p132 = scmp.eq.s32.totalorder %s19, 0
      %p133 = por %p131, %p132
      %p134 = scmp.ne.s32.totalorder %s123, %s126
      %p135 = scmp.eq.s32.totalorder %s24, 1
      %p136 = por %p134, %p135
      %p137 = scmp.ne.s32.totalorder %s126, %s127
      %p138 = scmp.eq.s32.totalorder %s24, 0
      %p139 = por %p137, %p138
      %p140 = scmp.ne.s32.totalorder %s126, %s127
      %p141 = scmp.eq.s32.totalorder %s25, 1
      %p142 = por %p140, %p141
      %p144 = scmp.ne.s32.totalorder %s127, %s143
      %p145 = scmp.eq.s32.totalorder %s25, 0
      %p146 = por %p144, %p145
      %p147 = scmp.le.s32.totalorder 1, %s19
      %p148 = scmp.lt.s32.totalorder %s19, 3
      %p149 = pnand %p147, %p148
      %p150 = pneg %p149
      // Predicated region
      $region9: #{tpu_custom_call.1} parent=5 // pred_check
        _
      $region10: #{tpu_custom_call.1} parent=5 // pred_check_branch
        %152 = sbr.rel (%p149) target = $region12
      $region11: #{tpu_custom_call.1} parent=5 // pred_region
        %s153 = ssub.s32 %s19, 1
        // Predicated region
        $region13: #{tpu_custom_call.1} parent=11 // pred_check
          %p154 = pneg %p92
        $region14: #{tpu_custom_call.1} parent=11 // pred_check_branch
          %156 = sbr.rel (%p154) target = $region16
        $region15: #{tpu_custom_call.1} parent=11 // pred_region
          %158 = vsyncadd [#allocation6], 0
          %s159 = sshll.u32 %s2, 4
          %s160 = int_to_ptr.hbm [resolvable:$true] %s159
          %s161 = sshll.u32 [#allocation7], 4
          %s162 = int_to_ptr.vmem [resolvable:$true] %s161
          %167 = dma.hbm_to_vmem [thread:$0]  %s160, 1024, %s162, [#allocation6], 128, 128, 8
        $region16: #{tpu_custom_call.1} parent=11 // pred_fallthru
          _
        // Predicated region
        $region17: #{tpu_custom_call.1} parent=11 // pred_check
          %p168 = pneg %p113
        $region18: #{tpu_custom_call.1} parent=11 // pred_check_branch
          %170 = sbr.rel (%p168) target = $region20
        $region19: #{tpu_custom_call.1} parent=11 // pred_region
          _
        $region20: #{tpu_custom_call.1} parent=11 // pred_fallthru
          _
      $region12: #{tpu_custom_call.1} parent=5 // pred_fallthru
        _
      %p171 = scmp.lt.s32.totalorder %s19, 2
      // Predicated region
      $region21: #{tpu_custom_call.1} parent=5 // pred_check
        %p172 = pneg %p171
      $region22: #{tpu_custom_call.1} parent=5 // pred_check_branch
        %174 = sbr.rel (%p172) target = $region24
      $region23: #{tpu_custom_call.1} parent=5 // pred_region
        // Predicated region
        $region25: #{tpu_custom_call.1} parent=23 // pred_check
          %p175 = pneg %p39
        $region26: #{tpu_custom_call.1} parent=23 // pred_check_branch
          %177 = sbr.rel (%p175) target = $region28
        $region27: #{tpu_custom_call.1} parent=23 // pred_region
          %s178 = sand.u32 %s29, 1
          %s179 = scalar_lea.sflag [#allocation3], %s178
          %s180 = sand.u32 %s29, 1
          %s181 = smul.addr %s180, 16
          %s182 = scalar_lea.vmem [#allocation2], %s181
          %184 = vsyncadd %s179, 0
          %s185 = smul.addr %s19, 2
          %s186 = smul.addr %s185, 8
          %s187 = scalar_lea.hbm %s0, %s186
          %s188 = sshll.u32 %s187, 4
          %s189 = int_to_ptr.hbm [resolvable:$true] %s188
          %s190 = sshll.u32 %s182, 4
          %s191 = int_to_ptr.vmem [resolvable:$true] %s190
          %196 = dma.hbm_to_vmem [thread:$0]  %s189, 256, %s191, %s179, 128, 128, 8
        $region28: #{tpu_custom_call.1} parent=23 // pred_fallthru
          _
        // Predicated region
        $region29: #{tpu_custom_call.1} parent=23 // pred_check
          %p197 = pneg %p65
        $region30: #{tpu_custom_call.1} parent=23 // pred_check_branch
          %199 = sbr.rel (%p197) target = $region32
        $region31: #{tpu_custom_call.1} parent=23 // pred_region
          %s200 = sand.u32 %s19, 1
          %s201 = scalar_lea.sflag [#allocation6], %s200
          %s202 = sand.u32 %s55, 1
          %s203 = smul.addr %s202, 16
          %s204 = scalar_lea.vmem [#allocation5], %s203
          %206 = vsyncadd %s201, 0
          %s207 = smul.addr %s19, 2
          %s208 = smul.addr %s207, 8
          %s209 = scalar_lea.hbm %s1, %s208
          %s210 = sshll.u32 %s209, 4
          %s211 = int_to_ptr.hbm [resolvable:$true] %s210
          %s212 = sshll.u32 %s204, 4
          %s213 = int_to_ptr.vmem [resolvable:$true] %s212
          %218 = dma.hbm_to_vmem [thread:$0]  %s211, 256, %s213, %s201, 128, 128, 8
        $region32: #{tpu_custom_call.1} parent=23 // pred_fallthru
          _
      $region24: #{tpu_custom_call.1} parent=5 // pred_fallthru
        _
      %p219 = scmp.le.s32.totalorder 1, %s19
      %p220 = scmp.lt.s32.totalorder %s19, 3
      %p221 = pnand %p219, %p220
      %p222 = pneg %p221
      // Predicated region
      $region33: #{tpu_custom_call.1} parent=5 // pred_check
        _
      $region34: #{tpu_custom_call.1} parent=5 // pred_check_branch
        %224 = sbr.rel (%p221) target = $region36
      $region35: #{tpu_custom_call.1} parent=5 // pred_region
        %s225 = ssub.s32 %s19, 1
        %s226 = sand.u32 %s32, 1
        %s227 = scalar_lea.sflag [#allocation3], %s226
        %s228 = sand.u32 %s32, 1
        %s229 = smul.addr %s228, 16
        %s230 = scalar_lea.vmem [#allocation2], %s229
        // Predicated region
        $region37: #{tpu_custom_call.1} parent=35 // pred_check
          %p231 = pneg %p45
        $region38: #{tpu_custom_call.1} parent=35 // pred_check_branch
          %233 = sbr.rel (%p231) target = $region40
        $region39: #{tpu_custom_call.1} parent=35 // pred_region
          %235 = dma.done %s227, 256
        $region40: #{tpu_custom_call.1} parent=35 // pred_fallthru
          _
        %s236 = sand.u32 %s24, 1
        %s237 = scalar_lea.sflag [#allocation6], %s236
        %s238 = sand.u32 %s58, 1
        %s239 = smul.addr %s238, 16
        %s240 = scalar_lea.vmem [#allocation5], %s239
        // Predicated region
        $region41: #{tpu_custom_call.1} parent=35 // pred_check
          %p241 = pneg %p71
        $region42: #{tpu_custom_call.1} parent=35 // pred_check_branch
          %243 = sbr.rel (%p241) target = $region44
        $region43: #{tpu_custom_call.1} parent=35 // pred_region
          %245 = dma.done %s237, 256
        $region44: #{tpu_custom_call.1} parent=35 // pred_fallthru
          _
        // Predicated region
        $region45: #{tpu_custom_call.1} parent=35 // pred_check
          %p246 = pneg %p92
        $region46: #{tpu_custom_call.1} parent=35 // pred_check_branch
          %248 = sbr.rel (%p246) target = $region48
        $region47: #{tpu_custom_call.1} parent=35 // pred_region
          %250 = dma.done [#allocation6], 1024
        $region48: #{tpu_custom_call.1} parent=35 // pred_fallthru
          _
        %s251 = sand.u32 %s32, 1
        %s252 = scalar_lea.sflag [#allocation3], %s251
        %s253 = sand.u32 %s32, 1
        %s254 = smul.addr %s253, 16
        %s255 = scalar_lea.vmem [#allocation2], %s254
        %p256 = pneg %p45
        %p257 = pneg %p42
        %s258 = sand.u32 %s24, 1
        %s259 = scalar_lea.sflag [#allocation6], %s258
        %s260 = sand.u32 %s58, 1
        %s261 = smul.addr %s260, 16
        %s262 = scalar_lea.vmem [#allocation5], %s261
        %p263 = pneg %p71
        %p264 = pneg %p68
        %p265 = pneg %p92
        %p266 = pneg %p89
        %p267 = pneg %p113
        %p268 = pneg %p110
        %p269 = pneg %p139
        %p270 = pneg %p136
        %s271 = sand.u32 %s126, 1
        %s272 = scalar_lea.sflag [#allocation4], %s271
        %s273 = sand.u32 %s126, 1
        %s274 = smul.addr %s273, 16
        %s275 = scalar_lea.vmem [#allocation8], %s274
        %v276 = vld [vmem:[%s230] sm:$0xff]
        %v277 = vld [vmem:[%s230 + $0x8] sm:$0xff]
        %v278 = vld [vmem:[%s240] sm:$0xff]
        %v279 = vld [vmem:[%s240 + $0x8] sm:$0xff]
        %v280 = vld [vmem:[%s3] sm:$0x1]
        %v282 = vperm.slane %v280, 0
        %v284 = vadd.f32 %v276, %v282
        %v285 = vadd.f32 %v277, %v282
        %vm286 = vcmask 130048
        %v288 = vsel %vm286, %v278, 0
        %v291 = vsel %vm286, %v279, 0
        %293 = vmatpush.msra.mxu0 0.0
        %294 = vmatpush.msra.mxu0 0.0
        %295 = vmatpush.msra.mxu0 0.0
        %296 = vmatpush.msra.mxu0 0.0
        %297 = vmatpush.msra.mxu0 0.0
        %298 = vmatpush.msra.mxu0 0.0
        %299 = vmatpush.msra.mxu0 0.0
        %300 = vmatpush.msra.mxu0 0.0
        %301 = vmatpush.msra.mxu0 0.0
        %302 = vmatpush.msra.mxu0 0.0
        %303 = vmatpush.msra.mxu0 0.0
        %304 = vmatpush.msra.mxu0 0.0
        %305 = vmatpush.msra.mxu0 0.0
        %306 = vmatpush.msra.mxu0 0.0
        %307 = vmatpush.msra.mxu0 %v277
        %308 = vmatpush.msra.mxu0 %v276
        %309 = vmatmul.f32.gmra.mxu0 %v288
        %v310 = vpop.f32.mrf.mxu0
        %v311 = vadd.f32 0.0, %v310
        %312 = vmatmul.f32.gmra.mxu0 %v291
        %v313 = vpop.f32.mrf.mxu0
        %v314 = vadd.f32 0.0, %v313
        %315 = vdwg.mxu0
        %v316 = vld [vmem:[#allocation7] sm:$0xff]
        %v317 = vld [vmem:[#allocation7 + $0x8] sm:$0xff]
        %v318 = vld [vmem:[#allocation7 + $0x10] sm:$0xff]
        %v319 = vld [vmem:[#allocation7 + $0x18] sm:$0xff]
        %vm320 = vcmask 261120
        %v322 = vsel %vm320, %v311, 0
        %v325 = vsel %vm320, %v314, 0
        %327 = vmatpush.msra.mxu0 0.0
        %328 = vmatpush.msra.mxu0 0.0
        %329 = vmatpush.msra.mxu0 0.0
        %330 = vmatpush.msra.mxu0 0.0
        %331 = vmatpush.msra.mxu0 0.0
        %332 = vmatpush.msra.mxu0 0.0
        %333 = vmatpush.msra.mxu0 0.0
        %334 = vmatpush.msra.mxu0 0.0
        %335 = vmatpush.msra.mxu0 0.0
        %336 = vmatpush.msra.mxu0 0.0
        %337 = vmatpush.msra.mxu0 0.0
        %338 = vmatpush.msra.mxu0 0.0
        %339 = vmatpush.msra.mxu0 %v319
        %340 = vmatpush.msra.mxu0 %v318
        %341 = vmatpush.msra.mxu0 %v317
        %342 = vmatpush.msra.mxu0 %v316
        %343 = vmatmul.f32.gmra.mxu0 %v322
        %v344 = vpop.f32.mrf.mxu0
        %v345 = vadd.f32 0.0, %v344
        %346 = vmatmul.f32.gmra.mxu0 %v325
        %v347 = vpop.f32.mrf.mxu0
        %v348 = vadd.f32 0.0, %v347
        %349 = vdwg.mxu0
        %v350 = vadd.f32 %v284, %v345
        %v351 = vadd.f32 %v285, %v348
        %352 = vmatpush.msra.mxu0 0.0
        %353 = vmatpush.msra.mxu0 0.0
        %354 = vmatpush.msra.mxu0 0.0
        %355 = vmatpush.msra.mxu0 0.0
        %356 = vmatpush.msra.mxu0 0.0
        %357 = vmatpush.msra.mxu0 0.0
        %358 = vmatpush.msra.mxu0 0.0
        %359 = vmatpush.msra.mxu0 0.0
        %360 = vmatpush.msra.mxu0 0.0
        %361 = vmatpush.msra.mxu0 0.0
        %362 = vmatpush.msra.mxu0 0.0
        %363 = vmatpush.msra.mxu0 0.0
        %364 = vmatpush.msra.mxu0 0.0
        %365 = vmatpush.msra.mxu0 0.0
        %366 = vmatpush.msra.mxu0 %v314
        %367 = vmatpush.msra.mxu0 %v311
        %368 = vmatmul.f32.gmra.mxu0 %v288
        %v369 = vpop.f32.mrf.mxu0
        %v370 = vadd.f32 0.0, %v369
        %371 = vmatmul.f32.gmra.mxu0 %v291
        %v372 = vpop.f32.mrf.mxu0
        %v373 = vadd.f32 0.0, %v372
        %374 = vdwg.mxu0
        %s375 = scalar_lea.vmem [#allocation7], 32
        %v376 = vld [vmem:[%s375] sm:$0xff]
        %v377 = vld [vmem:[%s375 + $0x8] sm:$0xff]
        %v378 = vld [vmem:[%s375 + $0x10] sm:$0xff]
        %v379 = vld [vmem:[%s375 + $0x18] sm:$0xff]
        %v381 = vsel %vm320, %v370, 0
        %v384 = vsel %vm320, %v373, 0
        %386 = vmatpush.msra.mxu0 0.0
        %387 = vmatpush.msra.mxu0 0.0
        %388 = vmatpush.msra.mxu0 0.0
        %389 = vmatpush.msra.mxu0 0.0
        %390 = vmatpush.msra.mxu0 0.0
        %391 = vmatpush.msra.mxu0 0.0
        %392 = vmatpush.msra.mxu0 0.0
        %393 = vmatpush.msra.mxu0 0.0
        %394 = vmatpush.msra.mxu0 0.0
        %395 = vmatpush.msra.mxu0 0.0
        %396 = vmatpush.msra.mxu0 0.0
        %397 = vmatpush.msra.mxu0 0.0
        %398 = vmatpush.msra.mxu0 %v379
        %399 = vmatpush.msra.mxu0 %v378
        %400 = vmatpush.msra.mxu0 %v377
        %401 = vmatpush.msra.mxu0 %v376
        %402 = vmatmul.f32.gmra.mxu0 %v381
        %v403 = vpop.f32.mrf.mxu0
        %v404 = vadd.f32 0.0, %v403
        %405 = vmatmul.f32.gmra.mxu0 %v384
        %v406 = vpop.f32.mrf.mxu0
        %v407 = vadd.f32 0.0, %v406
        %408 = vdwg.mxu0
        %v409 = vadd.f32 %v350, %v404
        %v410 = vadd.f32 %v351, %v407
        %vm411 = vcmp.gt.f32.partialorder %v409, 0.0
        %vm412 = vcmp.gt.f32.partialorder %v410, 0.0
        %v413 = vmul.f32 %v409, 0.01
        %v414 = vmul.f32 %v410, 0.01
        %v415 = vsel %vm411, %v409, %v413
        %v416 = vsel %vm412, %v410, %v414
        %417 = vst.msk [vmem:[%s275] sm:$0xff] %vm320, %v415
        %418 = vst.msk [vmem:[%s275 + $0x8] sm:$0xff] %vm320, %v416
        %s419 = sand.u32 %s126, 1
        %s420 = scalar_lea.sflag [#allocation4], %s419
        %s421 = sand.u32 %s126, 1
        %s422 = smul.addr %s421, 16
        %s423 = scalar_lea.vmem [#allocation8], %s422
        // Predicated region
        $region49: #{tpu_custom_call.1} parent=35 // pred_check
          %p424 = pneg %p136
        $region50: #{tpu_custom_call.1} parent=35 // pred_check_branch
          %426 = sbr.rel (%p424) target = $region52
        $region51: #{tpu_custom_call.1} parent=35 // pred_region
          %428 = vsyncadd %s420, 0
          %s429 = smul.addr %s24, 2
          %s430 = smul.addr %s429, 8
          %s431 = scalar_lea.hbm %s4, %s430
          %s432 = sshll.u32 %s423, 4
          %s433 = int_to_ptr.vmem [resolvable:$true] %s432
          %s434 = sshll.u32 %s431, 4
          %s435 = int_to_ptr.hbm [resolvable:$true] %s434
          %440 = dma.vmem_to_hbm [thread:$0]  %s433, 256, %s435, %s420, 128, 128, 8
        $region52: #{tpu_custom_call.1} parent=35 // pred_fallthru
          _
      $region36: #{tpu_custom_call.1} parent=5 // pred_fallthru
        _
      %p441 = scmp.le.s32.totalorder 2, %s19
      // Predicated region
      $region53: #{tpu_custom_call.1} parent=5 // pred_check
        %p442 = pneg %p441
      $region54: #{tpu_custom_call.1} parent=5 // pred_check_branch
        %444 = sbr.rel (%p442) target = $region56
      $region55: #{tpu_custom_call.1} parent=5 // pred_region
        %s445 = ssub.s32 %s19, 2
        // Predicated region
        $region57: #{tpu_custom_call.1} parent=55 // pred_check
          %p446 = pneg %p142
        $region58: #{tpu_custom_call.1} parent=55 // pred_check_branch
          %448 = sbr.rel (%p446) target = $region60
        $region59: #{tpu_custom_call.1} parent=55 // pred_region
          %s449 = sand.u32 %s127, 1
          %s450 = scalar_lea.sflag [#allocation4], %s449
          %s451 = sand.u32 %s127, 1
          %s452 = smul.addr %s451, 16
          %s453 = scalar_lea.vmem [#allocation8], %s452
          %455 = dma.done %s450, 256
        $region60: #{tpu_custom_call.1} parent=55 // pred_fallthru
          _
      $region56: #{tpu_custom_call.1} parent=5 // pred_fallthru
        _
    $region6: #{tpu_custom_call.1} parent=1 // loop_footer
      %s23 = sadd.s32 1, %s19
    $region7: #{tpu_custom_call.1} parent=1 // loop_footer_branch
      %18 = sbr.rel target = $region3
    $region8: #{tpu_custom_call.1} parent=1 // loop_exit
      _
    %456 = vsyncpa [#allocation3], 1
    %s457 = scalar_lea.sflag [#allocation3], 1
    %458 = vsyncpa %s457, 1
    %459 = vsyncpa [#allocation6], 1
    %s460 = scalar_lea.sflag [#allocation6], 1
    %461 = vsyncpa %s460, 1
    %462 = vsyncpa [#allocation4], 1
    %s463 = scalar_lea.sflag [#allocation4], 1
    %464 = vsyncpa %s463, 1

</llo_original>
